<compile_context>
chip_gen: v7x
topology: tpu7x:2x2x1
jax: 0.10.0
libtpu: 0.0.40
codegen_flags: <defaults>
</compile_context>

<pallas_src>
import jax
import jax.numpy as jnp
from jax.experimental import pallas as pl
from jax.experimental.pallas import tpu as pltpu


def _round_up(x: int, m: int) -> int:
    return ((x + m - 1) // m) * m


def _pick_tm(batch: int, cap: int = 512, slack: float = 1.125) -> int:
    """Largest multiple-of-8 tile (<= cap) whose row padding waste is <= slack."""
    base = _round_up(batch, 8)
    hi = min(cap, base)
    for cand in range(hi, 7, -8):
        if _round_up(batch, cand) <= base * slack:
            return cand
    return 8


def _pick_div(dim_pad: int, cap: int = 512) -> int:
    """Largest multiple-of-128 divisor of dim_pad that is <= cap."""
    best = 128
    for cand in range(128, min(cap, dim_pad) + 1, 128):
        if dim_pad % cand == 0:
            best = cand
    return best


# --------------------------- kernels ---------------------------------------


def _linear_bias_fused_kernel(x_ref, w_ref, b_ref, o_ref):
    """Single K step: o = x @ W + b in one shot (f32 accumulate on the MXU)."""
    o_ref[...] = (
        jnp.dot(x_ref[...], w_ref[...], preferred_element_type=jnp.float32)
        + b_ref[...]
    ).astype(o_ref.dtype)


def _linear_bias_kred_kernel(x_ref, w_ref, b_ref, o_ref, acc_ref):
    """K streamed along grid axis 2; bias folded into the accumulator init."""
    k = pl.program_id(2)

    @pl.when(k == 0)
    def _():
        acc_ref[...] = jnp.broadcast_to(b_ref[...], acc_ref.shape)

    acc_ref[...] += jnp.dot(
        x_ref[...], w_ref[...], preferred_element_type=jnp.float32
    )

    @pl.when(k == pl.num_programs(2) - 1)
    def _():
        o_ref[...] = acc_ref[...].astype(o_ref.dtype)


# --------------------------- wrapper ----------------------------------------


def deterministic_mb_forward(
    x,
    weight_t,
    bias2d,
    num_outputs,
    *,
    tm=None,
    tn=None,
    tk=None,
    compute_dtype=jnp.bfloat16,
):
    """Pallas forward for DeterministicMB: mean = x @ W^T + b.

    x:         (B, K) float32 (K <= k_pad)
    weight_t:  (k_pad, n_pad) pre-transposed, pre-padded, bf16 (from init)
    bias2d:    (1, n_pad) float32, pre-padded (from init)
    returns:   (B, num_outputs) float32
    """
    assert x.ndim == 2
    B, K = x.shape
    k_pad, n_pad = weight_t.shape
    assert k_pad % 128 == 0 and n_pad % 128 == 0, "weight must be init-padded"
    assert K <= k_pad, f"x feature dim {K} exceeds weight K={k_pad}"
    assert bias2d.shape == (1, n_pad)
    assert num_outputs <= n_pad

    auto_mn = (tm is None) and (tn is None)

    # ---- tile selection (tight, (8,128)-legal) ----
    if tm is None:
        tm = _pick_tm(B, cap=512)
    if tk is None:
        # Collapse the K grid axis whenever K fits in VMEM (head-sized layers).
        tk = k_pad if k_pad <= 2048 else _pick_div(k_pad, cap=512)
    if tn is None:
        tn = _pick_div(n_pad, cap=512)

    m_pad = _round_up(B, tm)

    # v7x: make sure both TensorCores get work; no-op on single-TC v5e/v6e.
    if auto_mn and (m_pad // tm) * (n_pad // tn) == 1:
        if tn % 256 == 0:
            tn //= 2
        elif tm % 16 == 0:
            tm //= 2
            m_pad = _round_up(B, tm)

    # ---- validate tiles against the (8,128) rule / divisibility ----
    assert tm > 0 and tm % 8 == 0, f"tm={tm} must be a multiple of 8"
    assert tk % 128 == 0 and k_pad % tk == 0, f"tk={tk} must divide k_pad={k_pad} (x128)"
    assert tn % 128 == 0 and n_pad % tn == 0, f"tn={tn} must divide n_pad={n_pad} (x128)"

    grid_m, grid_n, nk = m_pad // tm, n_pad // tn, k_pad // tk

    # ---- only x is touched per call (small); weight/bias already padded ----
    xp = x.astype(compute_dtype)
    if (m_pad, k_pad) != (B, K):
        xp = jnp.pad(xp, ((0, m_pad - B), (0, k_pad - K)))

    # Deeper weight buffering only when the weight block actually changes
    # across many grid steps and the per-step compute is tiny (small batch).
    w_kwargs = {}
    w_bufs = 2
    if tm <= 64 and nk * grid_n >= 3:
        w_kwargs = {"pipeline_mode": pl.Buffered(3)}
        w_bufs = 3

    # ---- explicit VMEM budget sized from the actual tiles ----
    xb = jnp.dtype(compute_dtype).itemsize
    wb = jnp.dtype(weight_t.dtype).itemsize
    est = (
        2 * tm * tk * xb            # double-buffered x tiles
        + w_bufs * tk * tn * wb     # weight tiles
        + 2 * tn * 4                # bias tiles
        + 2 * tm * tn * 4           # output tiles (f32)
        + (tm * tn * 4 if nk > 1 else 0)  # f32 accumulator scratch
    )
    vmem_limit = int(min(max(2 * est, 32 << 20), 48 << 20))

    out_shape = jax.ShapeDtypeStruct((m_pad, n_pad), jnp.float32)

    if nk == 1:
        out = pl.pallas_call(
            _linear_bias_fused_kernel,
            out_shape=out_shape,
            grid_spec=pltpu.PrefetchScalarGridSpec(
                num_scalar_prefetch=0,
                grid=(grid_m, grid_n),
                in_specs=[
                    pl.BlockSpec((tm, tk), lambda i, j: (i, 0)),             # x
                    pl.BlockSpec((tk, tn), lambda i, j: (0, j), **w_kwargs),  # W^T
                    pl.BlockSpec((1, tn), lambda i, j: (0, j)),              # bias
                ],
                out_specs=pl.BlockSpec((tm, tn), lambda i, j: (i, j)),
            ),
            compiler_params=pltpu.CompilerParams(
                dimension_semantics=("parallel", "parallel"),
                vmem_limit_bytes=vmem_limit,
            ),
        )(xp, weight_t, bias2d)
    else:
        out = pl.pallas_call(
            _linear_bias_kred_kernel,
            out_shape=out_shape,
            grid_spec=pltpu.PrefetchScalarGridSpec(
                num_scalar_prefetch=0,
                grid=(grid_m, grid_n, nk),
                in_specs=[
                    pl.BlockSpec((tm, tk), lambda i, j, k: (i, k)),             # x
                    pl.BlockSpec((tk, tn), lambda i, j, k: (k, j), **w_kwargs),  # W^T
                    pl.BlockSpec((1, tn), lambda i, j, k: (0, j)),              # bias
                ],
                out_specs=pl.BlockSpec((tm, tn), lambda i, j, k: (i, j)),
                scratch_shapes=[pltpu.VMEM((tm, tn), jnp.float32)],
            ),
            compiler_params=pltpu.CompilerParams(
                dimension_semantics=("parallel", "parallel", "arbitrary"),
                vmem_limit_bytes=vmem_limit,
            ),
        )(xp, weight_t, bias2d)

    return out[:B, :num_outputs]


def init_linear_params(key, num_inputs, num_outputs, *, param_dtype=jnp.bfloat16):
    """nn.Linear default init U(-1/sqrt(in), 1/sqrt(in)).

    Returns the weight already transposed to (K, N), zero-padded to multiples of
    128 and cast to bf16 (one-time cost, out of the hot path), plus the bias as
    a padded (1, n_pad) float32 row.
    """
    kw, kb = jax.random.split(key)
    bound = 1.0 / (num_inputs ** 0.5)
    weight = jax.random.uniform(
        kw, (num_outputs, num_inputs), jnp.float32, minval=-bound, maxval=bound)
    bias = jax.random.uniform(
        kb, (num_outputs,), jnp.float32, minval=-bound, maxval=bound)

    k_pad = _round_up(num_inputs, 128)
    n_pad = _round_up(num_outputs, 128)
    weight_t = (
        jnp.zeros((k_pad, n_pad), param_dtype)
        .at[:num_inputs, :num_outputs]
        .set(weight.T.astype(param_dtype))
    )
    bias2d = jnp.zeros((1, n_pad), jnp.float32).at[0, :num_outputs].set(bias)
    return weight_t, bias2d


if __name__ == "__main__":
    key = jax.random.PRNGKey(0)
    k_x, k_p, k_x2, k_p2 = jax.random.split(key, 4)

    # Small shapes consistent with the module's forward (an MLP head).
    B, num_inputs, num_outputs = 8, 32, 16
    x = jax.random.normal(k_x, (B, num_inputs), dtype=jnp.float32)
    weight_t, bias2d = init_linear_params(k_p, num_inputs, num_outputs)

    fwd = jax.jit(deterministic_mb_forward, static_argnums=(3,))
    out = jax.block_until_ready(fwd(x, weight_t, bias2d, num_outputs))
    assert out.shape == (B, num_outputs)

    # Reference in matching precision (bf16 operands, f32 accumulation).
    w_ref = weight_t[:num_inputs, :num_outputs].astype(jnp.float32)
    x_bf = x.astype(jnp.bfloat16).astype(jnp.float32)
    ref = x_bf @ w_ref + bias2d[0, :num_outputs]
    assert jnp.allclose(out, ref, atol=1e-4, rtol=1e-4)
    # Sanity vs full f32 math (bf16 quantization budget).
    ref_f32 = x @ w_ref + bias2d[0, :num_outputs]
    assert jnp.allclose(out, ref_f32, atol=5e-2, rtol=5e-2)

    # Check 2: non-aligned shapes, auto tiling (fused single-K path + v7x split).
    B2, in2, out2 = 300, 200, 150
    x2 = jax.random.normal(k_x2, (B2, in2), dtype=jnp.float32)
    w2_t, b2 = init_linear_params(k_p2, in2, out2)
    y2 = jax.block_until_ready(deterministic_mb_forward(x2, w2_t, b2, out2))
    ref2 = (x2.astype(jnp.bfloat16).astype(jnp.float32)
            @ w2_t[:in2, :out2].astype(jnp.float32)) + b2[0, :out2]
    assert y2.shape == (B2, out2)
    assert jnp.allclose(y2, ref2, atol=5e-3, rtol=5e-3)

    # Check 3: explicit tiles forcing the K-reduction (3-D grid, acc-scratch) path.
    y3 = jax.block_until_ready(
        deterministic_mb_forward(x2, w2_t, b2, out2, tm=128, tk=128, tn=128))
    assert y3.shape == (B2, out2)
    assert jnp.allclose(y3, ref2, atol=5e-3, rtol=5e-3)

    print("KERNEL_OK")
</pallas_src>

<mosaic_0001>
module attributes {stable_mosaic.version = 11 : i64} {
  func.func @_linear_bias_fused_kernel(%arg0: i32, %arg1: i32, %arg2: memref<8x128xbf16, #tpu.memory_space<vmem>>, %arg3: memref<128x128xbf16, #tpu.memory_space<vmem>>, %arg4: memref<1x128xf32, #tpu.memory_space<vmem>>, %arg5: memref<8x128xf32, #tpu.memory_space<vmem>>) attributes {dimension_semantics = [#tpu.dimension_semantics<parallel>, #tpu.dimension_semantics<parallel>], iteration_bounds = array<i64: 1, 1>, scalar_prefetch = 0 : i64, scratch_operands = 0 : i64, tpu.core_type = #tpu.core_type<tc>, window_params = [{transform_indices = @transform_0, window_bounds = array<i64: 8, 128>}, {transform_indices = @transform_1, window_bounds = array<i64: 128, 128>}, {transform_indices = @transform_2, window_bounds = array<i64: 1, 128>}, {transform_indices = @transform_3, window_bounds = array<i64: 8, 128>}]} {
    %c0 = arith.constant 0 : index
    %c0_0 = arith.constant 0 : index
    %0 = vector.load %arg2[%c0, %c0_0] : memref<8x128xbf16, #tpu.memory_space<vmem>>, vector<8x128xbf16>
    %c0_1 = arith.constant 0 : index
    %c0_2 = arith.constant 0 : index
    %1 = vector.load %arg3[%c0_1, %c0_2] : memref<128x128xbf16, #tpu.memory_space<vmem>>, vector<128x128xbf16>
    %cst = arith.constant dense<0.000000e+00> : vector<8x128xf32>
    %2 = tpu.matmul %0, %1, %cst {dimension_numbers = #tpu.dot_dimension_numbers<[1], [0], [0], [1], [0, 0, 1, 1], [], []>} : vector<8x128xbf16>, vector<128x128xbf16>, vector<8x128xf32> -> vector<8x128xf32>
    %c0_3 = arith.constant 0 : index
    %c0_4 = arith.constant 0 : index
    %3 = vector.load %arg4[%c0_3, %c0_4] : memref<1x128xf32, #tpu.memory_space<vmem>>, vector<1x128xf32>
    %4 = vector.broadcast %3 : vector<1x128xf32> to vector<8x128xf32>
    %5 = arith.addf %2, %4 : vector<8x128xf32>
    %c0_5 = arith.constant 0 : index
    %c0_6 = arith.constant 0 : index
    %6 = vector.load %arg5[%c0_5, %c0_6] : memref<8x128xf32, #tpu.memory_space<vmem>>, vector<8x128xf32>
    tpu.vector_store %arg5[%c0_5, %c0_6], %5 {strides = array<i32>} : memref<8x128xf32, #tpu.memory_space<vmem>>, vector<8x128xf32>,
    return
  }
  func.func @transform_0(%arg0: i32, %arg1: i32) -> (i32, i32) {
    %c0_i32 = arith.constant 0 : i32
    %c0_i32_0 = arith.constant 0 : i32
    return %arg0, %c0_i32 : i32, i32
  }
  func.func @transform_1(%arg0: i32, %arg1: i32) -> (i32, i32) {
    %c0_i32 = arith.constant 0 : i32
    %c0_i32_0 = arith.constant 0 : i32
    return %c0_i32, %arg1 : i32, i32
  }
  func.func @transform_2(%arg0: i32, %arg1: i32) -> (i32, i32) {
    %c0_i32 = arith.constant 0 : i32
    %c0_i32_0 = arith.constant 0 : i32
    return %c0_i32, %arg1 : i32, i32
  }
  func.func @transform_3(%arg0: i32, %arg1: i32) -> (i32, i32) {
    %c0_i32 = arith.constant 0 : i32
    return %arg0, %arg1 : i32, i32
  }
}

</mosaic_0001>

<llo_original>
// kernel: deterministic_mb_forward.1
$region0: #{deterministic_mb_forward.1}
  #allocation0 [shape = 'u32[]', space=smem, size = 0x4, offset = 0x4, fixed_abs, tag = 'smem constant byte address 0x4 - core index']
  #allocation1 [shape = 'u32[144,128]{1,0:T(1,128)}', space=vmem, size = 0x12000, scoped, tag = 'internal scratch']
  %s0 = inlined_call_operand.vmem [shape: bf16[8,128], index: 0, kind: input, shape index: {}]
  %s1 = inlined_call_operand.hbm [shape: bf16[128,128], index: 1, kind: input, shape index: {}]
  %s2 = inlined_call_operand.vmem [shape: f32[1,128], index: 2, kind: input, shape index: {}]
  %s3 = inlined_call_operand.hbm [shape: f32[8,128], index: 3, kind: output, shape index: {}]
  %s4 = sld [smem:[#allocation0]]
  $region26: #{deterministic_mb_forward.1} parent=0
    _
  %s6 = ssub.s32 1, %s4
  %s7 = scalar_select 0, %s6, %s4
  $region1: #{deterministic_mb_forward.1} parent=0
    #allocation2 [shape = 'u8[32768]{0}', space=vmem, size = 0x8000, scoped, tag = 'input window, operand 1, single buffered']
    #allocation3 [shape = 's32[1]{0}', space=sflag, size = 0x4, scoped, tag = 'scoped memory for deterministic_mb_forward.1']
    #allocation4 [shape = 's32[1]{0}', space=sflag, size = 0x4, scoped, tag = 'scoped memory for deterministic_mb_forward.1']
    #allocation5 [shape = 'u8[4096]{0}', space=vmem, size = 0x1000, scoped, tag = 'output window, operand 0, single buffered']
    %8 = vsyncpa [#allocation3], 0
    %9 = vsyncpa [#allocation4], 0
    // Predicated region
    $region2: #{deterministic_mb_forward.1} parent=1 // pred_check
      _
    $region3: #{deterministic_mb_forward.1} parent=1 // pred_check_branch
      %11 = sbr.rel (0) target = $region5
    $region4: #{deterministic_mb_forward.1} parent=1 // pred_region
      _
    $region5: #{deterministic_mb_forward.1} parent=1 // pred_fallthru
      _
    // Predicated region
    $region6: #{deterministic_mb_forward.1} parent=1 // pred_check
      _
    $region7: #{deterministic_mb_forward.1} parent=1 // pred_check_branch
      %13 = sbr.rel (0) target = $region9
    $region8: #{deterministic_mb_forward.1} parent=1 // pred_region
      %s15 = ssub.s32 1024, 1024
      %16 = vsyncadd [#allocation3], %s15
      %s17 = sshll.u32 [#allocation2], 4
      %s18 = int_to_ptr.vmem [resolvable:$true] %s17
      %23 = dma.hbm_to_vmem [thread:$0]  %s1, 1024, %s18, [#allocation3], 64, 64, 4
    $region9: #{deterministic_mb_forward.1} parent=1 // pred_fallthru
      _
    // Predicated region
    $region10: #{deterministic_mb_forward.1} parent=1 // pred_check
      _
    $region11: #{deterministic_mb_forward.1} parent=1 // pred_check_branch
      %25 = sbr.rel (0) target = $region13
    $region12: #{deterministic_mb_forward.1} parent=1 // pred_region
      _
    $region13: #{deterministic_mb_forward.1} parent=1 // pred_fallthru
      _
    // Predicated region
    $region14: #{deterministic_mb_forward.1} parent=1 // pred_check
      _
    $region15: #{deterministic_mb_forward.1} parent=1 // pred_check_branch
      %27 = sbr.rel (0) target = $region17
    $region16: #{deterministic_mb_forward.1} parent=1 // pred_region
      %28 = dma.done [#allocation3], 1024
    $region17: #{deterministic_mb_forward.1} parent=1 // pred_fallthru
      _
    %v30 = vld [vmem:[%s0] sm:$0xf]
    %v31 = vld [vmem:[#allocation2] sm:$0xf]
    %v32 = vld [vmem:[#allocation2 + $0x4] sm:$0xf]
    %v33 = vld [vmem:[#allocation2 + $0x8] sm:$0xf]
    %v34 = vld [vmem:[#allocation2 + $0xc] sm:$0xf]
    %v35 = vld [vmem:[#allocation2 + $0x10] sm:$0xf]
    %v36 = vld [vmem:[#allocation2 + $0x14] sm:$0xf]
    %v37 = vld [vmem:[#allocation2 + $0x18] sm:$0xf]
    %v38 = vld [vmem:[#allocation2 + $0x1c] sm:$0xf]
    %v39 = vld [vmem:[#allocation2 + $0x20] sm:$0xf]
    %v40 = vld [vmem:[#allocation2 + $0x24] sm:$0xf]
    %v41 = vld [vmem:[#allocation2 + $0x28] sm:$0xf]
    %v42 = vld [vmem:[#allocation2 + $0x2c] sm:$0xf]
    %v43 = vld [vmem:[#allocation2 + $0x30] sm:$0xf]
    %v44 = vld [vmem:[#allocation2 + $0x34] sm:$0xf]
    %v45 = vld [vmem:[#allocation2 + $0x38] sm:$0xf]
    %v46 = vld [vmem:[#allocation2 + $0x3c] sm:$0xf]
    %v47 = vld [vmem:[%s2] sm:$0x1]
    %v49 = vlaneseq
    %v50 = vshrl.u32 %v49, 7
    %v51 = vsub.s32 0, %v50
    %v52 = vrot.slane %v47, %v51
    %v70 = vunpack.c.l.b16 %v31
    %v71 = vunpack.c.l.b16 %v32
    %v72 = vunpack.c.l.b16 %v33
    %v73 = vunpack.c.l.b16 %v34
    %v74 = vunpack.c.l.b16 %v35
    %v75 = vunpack.c.l.b16 %v36
    %v76 = vunpack.c.l.b16 %v37
    %v77 = vunpack.c.l.b16 %v38
    %v78 = vunpack.c.l.b16 %v39
    %v79 = vunpack.c.l.b16 %v40
    %v80 = vunpack.c.l.b16 %v41
    %v81 = vunpack.c.l.b16 %v42
    %v82 = vunpack.c.l.b16 %v43
    %v83 = vunpack.c.l.b16 %v44
    %v84 = vunpack.c.l.b16 %v45
    %v85 = vunpack.c.l.b16 %v46
    %v86 = vpack.c.b16 %v71, %v70
    %v87 = vpack.c.b16 %v73, %v72
    %v88 = vpack.c.b16 %v75, %v74
    %v89 = vpack.c.b16 %v77, %v76
    %v90 = vpack.c.b16 %v79, %v78
    %v91 = vpack.c.b16 %v81, %v80
    %v92 = vpack.c.b16 %v83, %v82
    %v93 = vpack.c.b16 %v85, %v84
    %102 = vmatprep.subr.bf16.mxu0 0
    %103 = vmatpush1.bf16.msra.mxu0 %v86
    %104 = vmatprep.subr.bf16.mxu0 0
    %105 = vmatpush1.bf16.msra.mxu0 %v87
    %106 = vmatprep.subr.bf16.mxu0 0
    %107 = vmatpush1.bf16.msra.mxu0 %v88
    %108 = vmatprep.subr.bf16.mxu0 0
    %109 = vmatpush1.bf16.msra.mxu0 %v89
    %110 = vmatprep.subr.bf16.mxu0 0
    %111 = vmatpush1.bf16.msra.mxu0 %v90
    %112 = vmatprep.subr.bf16.mxu0 0
    %113 = vmatpush1.bf16.msra.mxu0 %v91
    %114 = vmatprep.subr.bf16.mxu0 0
    %115 = vmatpush1.bf16.msra.mxu0 %v92
    %116 = vmatprep.subr.bf16.mxu0 0
    %117 = vmatpush1.bf16.msra.mxu0 %v93
    %118 = vmatprep.subr.bf16.mxu0 0
    %119 = vmatpush1.bf16.msra.mxu0 0
    %120 = vmatprep.subr.bf16.mxu0 0
    %121 = vmatpush1.bf16.msra.mxu0 0
    %122 = vmatprep.subr.bf16.mxu0 0
    %123 = vmatpush1.bf16.msra.mxu0 0
    %124 = vmatprep.subr.bf16.mxu0 0
    %125 = vmatpush1.bf16.msra.mxu0 0
    %126 = vmatprep.subr.bf16.mxu0 0
    %127 = vmatpush1.bf16.msra.mxu0 0
    %128 = vmatprep.subr.bf16.mxu0 0
    %129 = vmatpush1.bf16.msra.mxu0 0
    %130 = vmatprep.subr.bf16.mxu0 0
    %131 = vmatpush1.bf16.msra.mxu0 0
    %132 = vmatprep.subr.bf16.mxu0 0
    %133 = vmatpush1.bf16.msra.mxu0 0
    %134 = vmatprep.mubr.bf16.mxu0 0
    %135 = vmatmul.mubr.bf16.gmra.mrb[0].mxu0 %v30
    %v136 = vpop.f32.mrb[0].mxu0
    %v137 = vadd.f32 %v52, %v136
    %v138 = vpop.f32.mrb[0].mxu0
    %v139 = vpop.f32.mrb[0].mxu0
    %v140 = vpop.f32.mrb[0].mxu0
    %141 = vdwg.mxu0
    %142 = vst [vmem:[#allocation5] sm:$0xff] %v137
    // Predicated region
    $region18: #{deterministic_mb_forward.1} parent=1 // pred_check
      _
    $region19: #{deterministic_mb_forward.1} parent=1 // pred_check_branch
      %144 = sbr.rel (0) target = $region21
    $region20: #{deterministic_mb_forward.1} parent=1 // pred_region
      %s146 = ssub.s32 128, 128
      %147 = vsyncadd [#allocation4], %s146
      %s149 = sshll.u32 [#allocation5], 4
      %s150 = int_to_ptr.vmem [resolvable:$true] %s149
      %152 = dma.vmem_to_hbm [thread:$0]  %s150, 128, %s3, [#allocation4]
    $region21: #{deterministic_mb_forward.1} parent=1 // pred_fallthru
      _
    // Predicated region
    $region22: #{deterministic_mb_forward.1} parent=1 // pred_check
      _
    $region23: #{deterministic_mb_forward.1} parent=1 // pred_check_branch
      %154 = sbr.rel (0) target = $region25
    $region24: #{deterministic_mb_forward.1} parent=1 // pred_region
      %155 = dma.done [#allocation4], 128
    $region25: #{deterministic_mb_forward.1} parent=1 // pred_fallthru
      _
    %156 = vsyncpa [#allocation3], 1
    %157 = vsyncpa [#allocation4], 1

</llo_original>
